<compile_context>
chip_gen: v5e
topology: v5e:2x2
jax: 0.10.0
libtpu: 0.0.40
codegen_flags: <defaults>
</compile_context>

<pallas_src>
import functools

import jax
import jax.numpy as jnp
from jax import lax
from jax.experimental import pallas as pl
from jax.experimental.pallas import tpu as pltpu

_LANE = 128


def _round_up(x, m):
    return (x + m - 1) // m * m


def _choose_batch_tile(B, Hp):
    """Batch tile: multiple of 128 (lane-dense packed output), capped for vreg
    pressure, and split so the parallel grid axis has >= 2 steps when B allows."""
    b = _round_up(B, _LANE)
    cap = 256 if Hp <= 128 else 128      # keep f32 h + bf16 copy under ~48 vregs
    tb = min(cap, b)
    if b >= 2 * _LANE and b // tb < 2:   # give megacore (v7x) two grid steps
        tb = max(_LANE, _round_up(b // 2, _LANE))
    return tb


def _mlp_kernel(n_layers, x_ref, w_in_ref, b_in_ref, w_hid_ref, b_hid_ref,
                w_out_ref, b_out_ref, o_ref):
    # input layer: (TB, n_obs) f32 -> bf16 @ (n_obs, Hp) bf16 -> f32 acc
    x = x_ref[...].astype(jnp.bfloat16)
    h = jnp.dot(x, w_in_ref[...], preferred_element_type=jnp.float32)
    h = jnp.maximum(h + b_in_ref[...], 0.0)                    # (TB, Hp) f32

    # hidden layers (n_layers is static & small -> unrolled)
    for l in range(n_layers):
        h = jnp.dot(h.astype(jnp.bfloat16), w_hid_ref[l],
                    preferred_element_type=jnp.float32)
        h = jnp.maximum(h + b_hid_ref[l], 0.0)                 # b_hid_ref[l]: (1, Hp)

    # output layer, lane-packed: (1, Hp) . (TB, Hp) contracted over Hp -> (1, TB)
    # (batch lands on the lane dim -> lane-dense, tiny writeback)
    v = lax.dot_general(w_out_ref[...], h.astype(jnp.bfloat16),
                        dimension_numbers=(((1,), (1,)), ((), ())),
                        preferred_element_type=jnp.float32)    # (1, TB)
    o_ref[...] = jnp.maximum(v + b_out_ref[...], 0.0)          # trailing ReLU


def prepare_params(params):
    """Pad hsize to the lane width, cast weights to bf16, transpose w_out.

    Call ONCE per parameter set (e.g. after each update), NOT per forward —
    this is the hoisted pad/cast work that used to run on every call.
    Zero padding is exact: padded rows/cols and zero biases stay zero through
    ReLU and the padded w_out columns contribute nothing to the value."""
    w_in, b_in = params["w_in"], params["b_in"]        # (n_obs, H), (1, H)
    w_hid, b_hid = params["w_hid"], params["b_hid"]    # (L, H, H),  (L, H)
    w_out, b_out = params["w_out"], params["b_out"]    # (H, 1),     (1, 1)
    H = w_in.shape[1]
    Hp = _round_up(H, _LANE)
    ph = Hp - H
    return {
        "w_in": jnp.pad(w_in, ((0, 0), (0, ph))).astype(jnp.bfloat16),
        "b_in": jnp.pad(b_in, ((0, 0), (0, ph))).astype(jnp.float32),
        "w_hid": jnp.pad(w_hid, ((0, 0), (0, ph), (0, ph))).astype(jnp.bfloat16),
        "b_hid": jnp.pad(b_hid[:, None, :],
                         ((0, 0), (0, 0), (0, ph))).astype(jnp.float32),
        # output weight stored transposed: (1, Hp) so the last matmul emits a
        # lane-packed (1, TB) tile (batch on lanes) instead of a (TB, 128) slab.
        "w_out_t": jnp.pad(w_out.T, ((0, 0), (0, ph))).astype(jnp.bfloat16),
        "b_out": jnp.asarray(b_out, jnp.float32).reshape(1, 1),
    }


def value_net_forward(obs, prepared):
    """obs: (B, n_obs) f32. prepared: output of prepare_params (padded bf16)."""
    w_in, b_in = prepared["w_in"], prepared["b_in"]
    w_hid, b_hid = prepared["w_hid"], prepared["b_hid"]
    w_out_t, b_out = prepared["w_out_t"], prepared["b_out"]

    B, n_obs = obs.shape
    n_layers, _, Hp = w_hid.shape

    TB = _choose_batch_tile(B, Hp)
    Bp = _round_up(B, TB)
    num_tiles = Bp // TB

    # only the batch dim is (cheaply) padded; features stay unpadded f32 and
    # are cast to bf16 inside the kernel.
    obs_p = obs.astype(jnp.float32)
    if Bp != B:
        obs_p = jnp.pad(obs_p, ((0, Bp - B), (0, 0)))

    weight_bytes = 2 * (w_in.size + w_hid.size + w_out_t.size)          # bf16
    bias_bytes = 4 * (b_in.size + b_hid.size + b_out.size)              # f32
    cost = pl.CostEstimate(
        flops=int(2 * B * Hp * (n_obs + n_layers * Hp + 1)),
        transcendentals=0,
        bytes_accessed=int(obs.size * 4 + weight_bytes + bias_bytes + B * 4))

    # VMEM budget: double-buffered activation tiles + (conservatively double-
    # buffered) resident weights; capped at 64 MiB so it is safe on v7x.
    vmem_needed = (2 * (TB * n_obs * 4 + TB * 4)
                   + 2 * (weight_bytes + bias_bytes))
    vmem_limit = int(min(64 << 20, max(2 * vmem_needed, 16 << 20)))

    out_packed = pl.pallas_call(
        functools.partial(_mlp_kernel, n_layers),
        out_shape=jax.ShapeDtypeStruct((num_tiles, 1, TB), jnp.float32),
        grid_spec=pltpu.PrefetchScalarGridSpec(
            num_scalar_prefetch=0,
            grid=(num_tiles,),
            in_specs=[
                # batch-tiled activations (pipelined across the grid)
                pl.BlockSpec((TB, n_obs), lambda i: (i, 0)),
                # weights / biases: constant index_map -> fetched once, VMEM-resident
                pl.BlockSpec(w_in.shape, lambda i: (0, 0)),
                pl.BlockSpec(b_in.shape, lambda i: (0, 0)),
                pl.BlockSpec(w_hid.shape, lambda i: (0, 0, 0)),
                pl.BlockSpec(b_hid.shape, lambda i: (0, 0, 0)),
                pl.BlockSpec(w_out_t.shape, lambda i: (0, 0)),
                pl.BlockSpec(b_out.shape, lambda i: (0, 0)),
            ],
            # lane-packed output: one (1, TB) f32 tile per grid step
            out_specs=pl.BlockSpec((None, 1, TB), lambda i: (i, 0, 0)),
        ),
        compiler_params=pltpu.CompilerParams(
            dimension_semantics=("parallel",),     # shard batch tiles across TCs
            vmem_limit_bytes=vmem_limit),
        cost_estimate=cost,
    )(obs_p, w_in, b_in, w_hid, b_hid, w_out_t, b_out)

    # unpack lanes back to batch rows, drop batch padding
    return out_packed.reshape(Bp, 1)[:B]


def init_params(key, n_observations, n_layers, hsize):
    """Weights stored transposed vs nn.Linear: (in_features, out_features)."""
    ks = jax.random.split(key, 6)
    s_in = 1.0 / jnp.sqrt(n_observations)
    s_h = 1.0 / jnp.sqrt(hsize)
    return {
        "w_in": jax.random.uniform(ks[0], (n_observations, hsize),
                                   jnp.float32, -s_in, s_in),
        "b_in": jax.random.uniform(ks[1], (1, hsize), jnp.float32, -s_in, s_in),
        "w_hid": jax.random.uniform(ks[2], (n_layers, hsize, hsize),
                                    jnp.float32, -s_h, s_h),
        "b_hid": jax.random.uniform(ks[3], (n_layers, hsize),
                                    jnp.float32, -s_h, s_h),
        "w_out": jax.random.uniform(ks[4], (hsize, 1), jnp.float32, -s_h, s_h),
        "b_out": jax.random.uniform(ks[5], (1, 1), jnp.float32, -s_h, s_h),
    }


def reference_forward(obs, params, n_layers):
    """Pure-JAX f32 reference matching the PyTorch ValueNet.forward."""
    h = jnp.maximum(obs @ params["w_in"] + params["b_in"], 0.0)
    for l in range(n_layers):
        h = jnp.maximum(h @ params["w_hid"][l] + params["b_hid"][l][None, :],
                        0.0)
    return jnp.maximum(h @ params["w_out"] + params["b_out"], 0.0)


if __name__ == "__main__":
    # small shapes consistent with the module
    batch = 8
    n_observations = 16
    n_layers = 2
    hsize = 32

    key = jax.random.PRNGKey(0)
    k_obs, k_params = jax.random.split(key)
    obs = jax.random.normal(k_obs, (batch, n_observations), jnp.float32)
    params = init_params(k_params, n_observations, n_layers, hsize)

    prepared = prepare_params(params)      # hoisted: do once per param set
    out = value_net_forward(obs, prepared)
    out = jax.block_until_ready(out)

    ref = reference_forward(obs, params, n_layers)
    assert out.shape == (batch, 1), out.shape
    # bf16 matmuls with f32 accumulation -> compare with an absolute tolerance
    assert jnp.allclose(out, ref, atol=5e-2, rtol=0.0), "mismatch vs reference"

    print("KERNEL_OK")
</pallas_src>

<mosaic_0001>
module attributes {stable_mosaic.version = 11 : i64} {
  func.func @_mlp_kernel(%arg0: i32, %arg1: memref<128x16xf32, #tpu.memory_space<vmem>>, %arg2: memref<16x128xbf16, #tpu.memory_space<vmem>>, %arg3: memref<1x128xf32, #tpu.memory_space<vmem>>, %arg4: memref<2x128x128xbf16, #tpu.memory_space<vmem>>, %arg5: memref<2x1x128xf32, #tpu.memory_space<vmem>>, %arg6: memref<1x128xbf16, #tpu.memory_space<vmem>>, %arg7: memref<1x1xf32, #tpu.memory_space<vmem>>, %arg8: memref<1x1x128xf32, #tpu.memory_space<vmem>>) attributes {dimension_semantics = [#tpu.dimension_semantics<parallel>], iteration_bounds = array<i64: 1>, scalar_prefetch = 0 : i64, scratch_operands = 0 : i64, tpu.core_type = #tpu.core_type<tc>, window_params = [{transform_indices = @transform_0, window_bounds = array<i64: 128, 16>}, {pipeline_mode = #tpu.pipeline_mode<synchronous>, transform_indices = @transform_1, window_bounds = array<i64: 16, 128>}, {pipeline_mode = #tpu.pipeline_mode<synchronous>, transform_indices = @transform_2, window_bounds = array<i64: 1, 128>}, {pipeline_mode = #tpu.pipeline_mode<synchronous>, transform_indices = @transform_3, window_bounds = array<i64: 2, 128, 128>}, {pipeline_mode = #tpu.pipeline_mode<synchronous>, transform_indices = @transform_4, window_bounds = array<i64: 2, 1, 128>}, {pipeline_mode = #tpu.pipeline_mode<synchronous>, transform_indices = @transform_5, window_bounds = array<i64: 1, 128>}, {pipeline_mode = #tpu.pipeline_mode<synchronous>, transform_indices = @transform_6, window_bounds = array<i64: 1, 1>}, {transform_indices = @transform_7, window_bounds = array<i64: 1, 1, 128>}]} {
    %c0 = arith.constant 0 : index
    %c0_0 = arith.constant 0 : index
    %0 = vector.load %arg1[%c0, %c0_0] : memref<128x16xf32, #tpu.memory_space<vmem>>, vector<128x16xf32>
    %1 = arith.truncf %0 : vector<128x16xf32> to vector<128x16xbf16>
    %c0_1 = arith.constant 0 : index
    %c0_2 = arith.constant 0 : index
    %2 = vector.load %arg2[%c0_1, %c0_2] : memref<16x128xbf16, #tpu.memory_space<vmem>>, vector<16x128xbf16>
    %cst = arith.constant dense<0.000000e+00> : vector<128x128xf32>
    %3 = tpu.matmul %1, %2, %cst {dimension_numbers = #tpu.dot_dimension_numbers<[1], [0], [0], [1], [0, 0, 1, 1], [], []>} : vector<128x16xbf16>, vector<16x128xbf16>, vector<128x128xf32> -> vector<128x128xf32>
    %c0_3 = arith.constant 0 : index
    %c0_4 = arith.constant 0 : index
    %4 = vector.load %arg3[%c0_3, %c0_4] : memref<1x128xf32, #tpu.memory_space<vmem>>, vector<1x128xf32>
    %5 = vector.broadcast %4 : vector<1x128xf32> to vector<128x128xf32>
    %6 = arith.addf %3, %5 : vector<128x128xf32>
    %cst_5 = arith.constant 0.000000e+00 : f32
    %7 = vector.broadcast %cst_5 : f32 to vector<128x128xf32>
    %8 = arith.maximumf %6, %7 : vector<128x128xf32>
    %9 = arith.truncf %8 : vector<128x128xf32> to vector<128x128xbf16>
    %c0_6 = arith.constant 0 : index
    %c0_7 = arith.constant 0 : index
    %c0_8 = arith.constant 0 : index
    %10 = vector.load %arg4[%c0_6, %c0_7, %c0_8] : memref<2x128x128xbf16, #tpu.memory_space<vmem>>, vector<1x128x128xbf16>
    %11 = vector.shape_cast %10 : vector<1x128x128xbf16> to vector<128x128xbf16>
    %cst_9 = arith.constant dense<0.000000e+00> : vector<128x128xf32>
    %12 = tpu.matmul %9, %11, %cst_9 {dimension_numbers = #tpu.dot_dimension_numbers<[1], [0], [0], [1], [0, 0, 1, 1], [], []>} : vector<128x128xbf16>, vector<128x128xbf16>, vector<128x128xf32> -> vector<128x128xf32>
    %c0_10 = arith.constant 0 : index
    %c0_11 = arith.constant 0 : index
    %c0_12 = arith.constant 0 : index
    %13 = vector.load %arg5[%c0_10, %c0_11, %c0_12] : memref<2x1x128xf32, #tpu.memory_space<vmem>>, vector<1x1x128xf32>
    %14 = vector.shape_cast %13 : vector<1x1x128xf32> to vector<1x128xf32>
    %15 = vector.broadcast %14 : vector<1x128xf32> to vector<128x128xf32>
    %16 = arith.addf %12, %15 : vector<128x128xf32>
    %cst_13 = arith.constant 0.000000e+00 : f32
    %17 = vector.broadcast %cst_13 : f32 to vector<128x128xf32>
    %18 = arith.maximumf %16, %17 : vector<128x128xf32>
    %19 = arith.truncf %18 : vector<128x128xf32> to vector<128x128xbf16>
    %c1 = arith.constant 1 : index
    %c0_14 = arith.constant 0 : index
    %c0_15 = arith.constant 0 : index
    %20 = vector.load %arg4[%c1, %c0_14, %c0_15] : memref<2x128x128xbf16, #tpu.memory_space<vmem>>, vector<1x128x128xbf16>
    %21 = vector.shape_cast %20 : vector<1x128x128xbf16> to vector<128x128xbf16>
    %cst_16 = arith.constant dense<0.000000e+00> : vector<128x128xf32>
    %22 = tpu.matmul %19, %21, %cst_16 {dimension_numbers = #tpu.dot_dimension_numbers<[1], [0], [0], [1], [0, 0, 1, 1], [], []>} : vector<128x128xbf16>, vector<128x128xbf16>, vector<128x128xf32> -> vector<128x128xf32>
    %c1_17 = arith.constant 1 : index
    %c0_18 = arith.constant 0 : index
    %c0_19 = arith.constant 0 : index
    %23 = vector.load %arg5[%c1_17, %c0_18, %c0_19] : memref<2x1x128xf32, #tpu.memory_space<vmem>>, vector<1x1x128xf32>
    %24 = vector.shape_cast %23 : vector<1x1x128xf32> to vector<1x128xf32>
    %25 = vector.broadcast %24 : vector<1x128xf32> to vector<128x128xf32>
    %26 = arith.addf %22, %25 : vector<128x128xf32>
    %cst_20 = arith.constant 0.000000e+00 : f32
    %27 = vector.broadcast %cst_20 : f32 to vector<128x128xf32>
    %28 = arith.maximumf %26, %27 : vector<128x128xf32>
    %c0_21 = arith.constant 0 : index
    %c0_22 = arith.constant 0 : index
    %29 = vector.load %arg6[%c0_21, %c0_22] : memref<1x128xbf16, #tpu.memory_space<vmem>>, vector<1x128xbf16>
    %30 = arith.truncf %28 : vector<128x128xf32> to vector<128x128xbf16>
    %cst_23 = arith.constant dense<0.000000e+00> : vector<1x128xf32>
    %31 = tpu.matmul %29, %30, %cst_23 {dimension_numbers = #tpu.dot_dimension_numbers<[1], [1], [0], [0], [0, 0, 1, 0], [], []>} : vector<1x128xbf16>, vector<128x128xbf16>, vector<1x128xf32> -> vector<1x128xf32>
    %c0_24 = arith.constant 0 : index
    %c0_25 = arith.constant 0 : index
    %32 = vector.load %arg7[%c0_24, %c0_25] : memref<1x1xf32, #tpu.memory_space<vmem>>, vector<1x1xf32>
    %33 = vector.broadcast %32 : vector<1x1xf32> to vector<1x128xf32>
    %34 = arith.addf %31, %33 : vector<1x128xf32>
    %cst_26 = arith.constant 0.000000e+00 : f32
    %35 = vector.broadcast %cst_26 : f32 to vector<1x128xf32>
    %36 = arith.maximumf %34, %35 : vector<1x128xf32>
    %c0_27 = arith.constant 0 : index
    %c0_28 = arith.constant 0 : index
    %c0_29 = arith.constant 0 : index
    %37 = vector.load %arg8[%c0_27, %c0_28, %c0_29] : memref<1x1x128xf32, #tpu.memory_space<vmem>>, vector<1x1x128xf32>
    %38 = vector.shape_cast %37 : vector<1x1x128xf32> to vector<1x128xf32>
    %39 = vector.shape_cast %36 : vector<1x128xf32> to vector<1x1x128xf32>
    tpu.vector_store %arg8[%c0_27, %c0_28, %c0_29], %39 {strides = array<i32>} : memref<1x1x128xf32, #tpu.memory_space<vmem>>, vector<1x1x128xf32>,
    return
  }
  func.func @transform_0(%arg0: i32) -> (i32, i32) {
    %c0_i32 = arith.constant 0 : i32
    %c0_i32_0 = arith.constant 0 : i32
    return %arg0, %c0_i32 : i32, i32
  }
  func.func @transform_1(%arg0: i32) -> (i32, i32) {
    %c0_i32 = arith.constant 0 : i32
    %c0_i32_0 = arith.constant 0 : i32
    %c0_i32_1 = arith.constant 0 : i32
    return %c0_i32, %c0_i32_0 : i32, i32
  }
  func.func @transform_2(%arg0: i32) -> (i32, i32) {
    %c0_i32 = arith.constant 0 : i32
    %c0_i32_0 = arith.constant 0 : i32
    %c0_i32_1 = arith.constant 0 : i32
    return %c0_i32, %c0_i32_0 : i32, i32
  }
  func.func @transform_3(%arg0: i32) -> (i32, i32, i32) {
    %c0_i32 = arith.constant 0 : i32
    %c0_i32_0 = arith.constant 0 : i32
    %c0_i32_1 = arith.constant 0 : i32
    %c0_i32_2 = arith.constant 0 : i32
    return %c0_i32, %c0_i32_0, %c0_i32_1 : i32, i32, i32
  }
  func.func @transform_4(%arg0: i32) -> (i32, i32, i32) {
    %c0_i32 = arith.constant 0 : i32
    %c0_i32_0 = arith.constant 0 : i32
    %c0_i32_1 = arith.constant 0 : i32
    %c0_i32_2 = arith.constant 0 : i32
    return %c0_i32, %c0_i32_0, %c0_i32_1 : i32, i32, i32
  }
  func.func @transform_5(%arg0: i32) -> (i32, i32) {
    %c0_i32 = arith.constant 0 : i32
    %c0_i32_0 = arith.constant 0 : i32
    %c0_i32_1 = arith.constant 0 : i32
    return %c0_i32, %c0_i32_0 : i32, i32
  }
  func.func @transform_6(%arg0: i32) -> (i32, i32) {
    %c0_i32 = arith.constant 0 : i32
    %c0_i32_0 = arith.constant 0 : i32
    %c0_i32_1 = arith.constant 0 : i32
    return %c0_i32, %c0_i32_0 : i32, i32
  }
  func.func @transform_7(%arg0: i32) -> (i32, i32, i32) {
    %c0_i32 = arith.constant 0 : i32
    %c0_i32_0 = arith.constant 0 : i32
    %c0_i32_1 = arith.constant 0 : i32
    return %arg0, %c0_i32, %c0_i32_0 : i32, i32, i32
  }
}

</mosaic_0001>

<llo_original>
// kernel: tpu_custom_call.1
$region0: #{tpu_custom_call.1}
  #allocation0 [shape = 'u32[]', space=smem, size = 0x4, offset = 0x4, fixed_abs, tag = 'smem constant byte address 0x4 - core index']
  #allocation1 [shape = 'u32[72,128]{1,0:T(1,128)}', space=vmem, size = 0x9000, scoped, tag = 'internal scratch']
  #allocation2 [shape = 'f32[1,1]{1,0:T(1,128)S(1)}', space=vmem, size = 0x200, scoped, tag = 'scoped memory for tpu_custom_call.1']
  %s0 = inlined_call_operand.vmem [shape: f32[128,16], index: 0, kind: input, shape index: {}]
  %s1 = inlined_call_operand.vmem [shape: bf16[16,128], index: 1, kind: input, shape index: {}]
  %s2 = inlined_call_operand.vmem [shape: f32[1,128], index: 2, kind: input, shape index: {}]
  %s3 = inlined_call_operand.vmem [shape: bf16[2,128,128], index: 3, kind: input, shape index: {}]
  %s4 = inlined_call_operand.vmem [shape: f32[2,1,128], index: 4, kind: input, shape index: {}]
  %s5 = inlined_call_operand.vmem [shape: bf16[1,128], index: 5, kind: input, shape index: {}]
  %s6 = inlined_call_operand.<no memory space> [shape: f32[1,1], index: 6, kind: input, shape index: {}]
  %s7 = inlined_call_operand.hbm [shape: f32[1,1,128], index: 7, kind: output, shape index: {}]
  %s8 = sld [smem:[#allocation0]]
  $region38: #{tpu_custom_call.1} parent=0
    _
  %s10 = ssub.s32 1, %s8
  %s11 = scalar_select 0, %s10, %s8
  %v12 = vstv %s6
  %13 = vst [vmem:[#allocation2] sm:$0x1] %v12
  $region1: #{tpu_custom_call.1} parent=0
    #allocation3 [shape = 'u8[512]{0}', space=vmem, size = 0x400, scoped, tag = 'output window, operand 0, single buffered']
    #allocation4 [shape = 's32[1]{0}', space=sflag, size = 0x4, scoped, tag = 'scoped memory for tpu_custom_call.1']
    %14 = vsyncpa [#allocation4], 0
    // Predicated region
    $region2: #{tpu_custom_call.1} parent=1 // pred_check
      _
    $region3: #{tpu_custom_call.1} parent=1 // pred_check_branch
      %16 = sbr.rel (0) target = $region5
    $region4: #{tpu_custom_call.1} parent=1 // pred_region
      _
    $region5: #{tpu_custom_call.1} parent=1 // pred_fallthru
      _
    // Predicated region
    $region6: #{tpu_custom_call.1} parent=1 // pred_check
      _
    $region7: #{tpu_custom_call.1} parent=1 // pred_check_branch
      %18 = sbr.rel (0) target = $region9
    $region8: #{tpu_custom_call.1} parent=1 // pred_region
      _
    $region9: #{tpu_custom_call.1} parent=1 // pred_fallthru
      _
    // Predicated region
    $region10: #{tpu_custom_call.1} parent=1 // pred_check
      _
    $region11: #{tpu_custom_call.1} parent=1 // pred_check_branch
      %20 = sbr.rel (0) target = $region13
    $region12: #{tpu_custom_call.1} parent=1 // pred_region
      _
    $region13: #{tpu_custom_call.1} parent=1 // pred_fallthru
      _
    // Predicated region
    $region14: #{tpu_custom_call.1} parent=1 // pred_check
      _
    $region15: #{tpu_custom_call.1} parent=1 // pred_check_branch
      %22 = sbr.rel (0) target = $region17
    $region16: #{tpu_custom_call.1} parent=1 // pred_region
      _
    $region17: #{tpu_custom_call.1} parent=1 // pred_fallthru
      _
    // Predicated region
    $region18: #{tpu_custom_call.1} parent=1 // pred_check
      _
    $region19: #{tpu_custom_call.1} parent=1 // pred_check_branch
      %24 = sbr.rel (0) target = $region21
    $region20: #{tpu_custom_call.1} parent=1 // pred_region
      _
    $region21: #{tpu_custom_call.1} parent=1 // pred_fallthru
      _
    // Predicated region
    $region22: #{tpu_custom_call.1} parent=1 // pred_check
      _
    $region23: #{tpu_custom_call.1} parent=1 // pred_check_branch
      %26 = sbr.rel (0) target = $region25
    $region24: #{tpu_custom_call.1} parent=1 // pred_region
      _
    $region25: #{tpu_custom_call.1} parent=1 // pred_fallthru
      _
    // Predicated region
    $region26: #{tpu_custom_call.1} parent=1 // pred_check
      _
    $region27: #{tpu_custom_call.1} parent=1 // pred_check_branch
      %28 = sbr.rel (0) target = $region29
    $region28: #{tpu_custom_call.1} parent=1 // pred_region
      _
    $region29: #{tpu_custom_call.1} parent=1 // pred_fallthru
      _
    %v30 = vld [vmem:[%s0] sm:$0xff]
    %v31 = vld [vmem:[%s0 + $0x8] sm:$0xff]
    %v32 = vld [vmem:[%s0 + $0x10] sm:$0xff]
    %v33 = vld [vmem:[%s0 + $0x18] sm:$0xff]
    %v34 = vld [vmem:[%s0 + $0x20] sm:$0xff]
    %v35 = vld [vmem:[%s0 + $0x28] sm:$0xff]
    %v36 = vld [vmem:[%s0 + $0x30] sm:$0xff]
    %v37 = vld [vmem:[%s0 + $0x38] sm:$0xff]
    %v38 = vld [vmem:[%s0 + $0x40] sm:$0xff]
    %v39 = vld [vmem:[%s0 + $0x48] sm:$0xff]
    %v40 = vld [vmem:[%s0 + $0x50] sm:$0xff]
    %v41 = vld [vmem:[%s0 + $0x58] sm:$0xff]
    %v42 = vld [vmem:[%s0 + $0x60] sm:$0xff]
    %v43 = vld [vmem:[%s0 + $0x68] sm:$0xff]
    %v44 = vld [vmem:[%s0 + $0x70] sm:$0xff]
    %v45 = vld [vmem:[%s0 + $0x78] sm:$0xff]
    %v46 = vpack.c.bf16 %v31, %v30
    %v47 = vpack.c.bf16 %v33, %v32
    %v48 = vpack.c.bf16 %v35, %v34
    %v49 = vpack.c.bf16 %v37, %v36
    %v50 = vpack.c.bf16 %v39, %v38
    %v51 = vpack.c.bf16 %v41, %v40
    %v52 = vpack.c.bf16 %v43, %v42
    %v53 = vpack.c.bf16 %v45, %v44
    %v54 = vld [vmem:[%s1] sm:$0xf]
    %v55 = vld [vmem:[%s1 + $0x4] sm:$0xf]
    %v56 = vld [vmem:[%s2] sm:$0x1]
    %v58 = vperm.slane %v56, 0
    %v62 = vunpack.c.l.b16 %v54
    %v63 = vunpack.c.l.b16 %v55
    %v64 = vpack.c.b16 %v63, %v62
    %vm66 = vcmask 130048
    %v68 = vsel %vm66, %v46, 0
    %v71 = vsel %vm66, %v47, 0
    %v74 = vsel %vm66, %v48, 0
    %v77 = vsel %vm66, %v49, 0
    %v80 = vsel %vm66, %v50, 0
    %v83 = vsel %vm66, %v51, 0
    %v86 = vsel %vm66, %v52, 0
    %v89 = vsel %vm66, %v53, 0
    %91 = vmatpush.bf16.msra.mxu0 0
    %92 = vmatpush.bf16.msra.mxu0 0
    %93 = vmatpush.bf16.msra.mxu0 0
    %94 = vmatpush.bf16.msra.mxu0 0
    %95 = vmatpush.bf16.msra.mxu0 0
    %96 = vmatpush.bf16.msra.mxu0 0
    %97 = vmatpush.bf16.msra.mxu0 0
    %98 = vmatpush.bf16.msra.mxu0 %v64
    %99 = vmatmul.bf16.gmra.mxu0 %v68
    %v100 = vpop.f32.mrf.mxu0
    %v101 = vadd.f32 %v58, %v100
    %v102 = vpop.f32.mrf.mxu0
    %v103 = vadd.f32 %v58, %v102
    %104 = vmatmul.bf16.gmra.mxu0 %v71
    %v105 = vpop.f32.mrf.mxu0
    %v106 = vadd.f32 %v58, %v105
    %v107 = vpop.f32.mrf.mxu0
    %v108 = vadd.f32 %v58, %v107
    %109 = vmatmul.bf16.gmra.mxu0 %v74
    %v110 = vpop.f32.mrf.mxu0
    %v111 = vadd.f32 %v58, %v110
    %v112 = vpop.f32.mrf.mxu0
    %v113 = vadd.f32 %v58, %v112
    %114 = vmatmul.bf16.gmra.mxu0 %v77
    %v115 = vpop.f32.mrf.mxu0
    %v116 = vadd.f32 %v58, %v115
    %v117 = vpop.f32.mrf.mxu0
    %v118 = vadd.f32 %v58, %v117
    %119 = vmatmul.bf16.gmra.mxu0 %v80
    %v120 = vpop.f32.mrf.mxu0
    %v121 = vadd.f32 %v58, %v120
    %v122 = vpop.f32.mrf.mxu0
    %v123 = vadd.f32 %v58, %v122
    %124 = vmatmul.bf16.gmra.mxu0 %v83
    %v125 = vpop.f32.mrf.mxu0
    %v126 = vadd.f32 %v58, %v125
    %v127 = vpop.f32.mrf.mxu0
    %v128 = vadd.f32 %v58, %v127
    %129 = vmatmul.bf16.gmra.mxu0 %v86
    %v130 = vpop.f32.mrf.mxu0
    %v131 = vadd.f32 %v58, %v130
    %v132 = vpop.f32.mrf.mxu0
    %v133 = vadd.f32 %v58, %v132
    %134 = vmatmul.bf16.gmra.mxu0 %v89
    %v135 = vpop.f32.mrf.mxu0
    %v136 = vadd.f32 %v58, %v135
    %v137 = vpop.f32.mrf.mxu0
    %v138 = vadd.f32 %v58, %v137
    %139 = vdwg.mxu0
    %v140 = vmax.f32 %v101, 0.0
    %v141 = vmax.f32 %v103, 0.0
    %v142 = vmax.f32 %v106, 0.0
    %v143 = vmax.f32 %v108, 0.0
    %v144 = vmax.f32 %v111, 0.0
    %v145 = vmax.f32 %v113, 0.0
    %v146 = vmax.f32 %v116, 0.0
    %v147 = vmax.f32 %v118, 0.0
    %v148 = vmax.f32 %v121, 0.0
    %v149 = vmax.f32 %v123, 0.0
    %v150 = vmax.f32 %v126, 0.0
    %v151 = vmax.f32 %v128, 0.0
    %v152 = vmax.f32 %v131, 0.0
    %v153 = vmax.f32 %v133, 0.0
    %v154 = vmax.f32 %v136, 0.0
    %v155 = vmax.f32 %v138, 0.0
    %v156 = vpack.c.bf16 %v141, %v140
    %v157 = vpack.c.bf16 %v143, %v142
    %v158 = vpack.c.bf16 %v145, %v144
    %v159 = vpack.c.bf16 %v147, %v146
    %v160 = vpack.c.bf16 %v149, %v148
    %v161 = vpack.c.bf16 %v151, %v150
    %v162 = vpack.c.bf16 %v153, %v152
    %v163 = vpack.c.bf16 %v155, %v154
    %v164 = vld [vmem:[%s3] sm:$0xf]
    %v165 = vld [vmem:[%s3 + $0x4] sm:$0xf]
    %v166 = vld [vmem:[%s3 + $0x8] sm:$0xf]
    %v167 = vld [vmem:[%s3 + $0xc] sm:$0xf]
    %v168 = vld [vmem:[%s3 + $0x10] sm:$0xf]
    %v169 = vld [vmem:[%s3 + $0x14] sm:$0xf]
    %v170 = vld [vmem:[%s3 + $0x18] sm:$0xf]
    %v171 = vld [vmem:[%s3 + $0x1c] sm:$0xf]
    %v172 = vld [vmem:[%s3 + $0x20] sm:$0xf]
    %v173 = vld [vmem:[%s3 + $0x24] sm:$0xf]
    %v174 = vld [vmem:[%s3 + $0x28] sm:$0xf]
    %v175 = vld [vmem:[%s3 + $0x2c] sm:$0xf]
    %v176 = vld [vmem:[%s3 + $0x30] sm:$0xf]
    %v177 = vld [vmem:[%s3 + $0x34] sm:$0xf]
    %v178 = vld [vmem:[%s3 + $0x38] sm:$0xf]
    %v179 = vld [vmem:[%s3 + $0x3c] sm:$0xf]
    %v180 = vld [vmem:[%s4] sm:$0x1]
    %v182 = vperm.slane %v180, 0
    %v200 = vunpack.c.l.b16 %v164
    %v201 = vunpack.c.l.b16 %v165
    %v202 = vunpack.c.l.b16 %v166
    %v203 = vunpack.c.l.b16 %v167
    %v204 = vunpack.c.l.b16 %v168
    %v205 = vunpack.c.l.b16 %v169
    %v206 = vunpack.c.l.b16 %v170
    %v207 = vunpack.c.l.b16 %v171
    %v208 = vunpack.c.l.b16 %v172
    %v209 = vunpack.c.l.b16 %v173
    %v210 = vunpack.c.l.b16 %v174
    %v211 = vunpack.c.l.b16 %v175
    %v212 = vunpack.c.l.b16 %v176
    %v213 = vunpack.c.l.b16 %v177
    %v214 = vunpack.c.l.b16 %v178
    %v215 = vunpack.c.l.b16 %v179
    %v216 = vpack.c.b16 %v201, %v200
    %v217 = vpack.c.b16 %v203, %v202
    %v218 = vpack.c.b16 %v205, %v204
    %v219 = vpack.c.b16 %v207, %v206
    %v220 = vpack.c.b16 %v209, %v208
    %v221 = vpack.c.b16 %v211, %v210
    %v222 = vpack.c.b16 %v213, %v212
    %v223 = vpack.c.b16 %v215, %v214
    %232 = vmatpush.bf16.msra.mxu0 %v223
    %233 = vmatpush.bf16.msra.mxu0 %v222
    %234 = vmatpush.bf16.msra.mxu0 %v221
    %235 = vmatpush.bf16.msra.mxu0 %v220
    %236 = vmatpush.bf16.msra.mxu0 %v219
    %237 = vmatpush.bf16.msra.mxu0 %v218
    %238 = vmatpush.bf16.msra.mxu0 %v217
    %239 = vmatpush.bf16.msra.mxu0 %v216
    %240 = vmatmul.bf16.gmra.mxu0 %v156
    %v241 = vpop.f32.mrf.mxu0
    %v242 = vadd.f32 %v182, %v241
    %v243 = vpop.f32.mrf.mxu0
    %v244 = vadd.f32 %v182, %v243
    %245 = vmatmul.bf16.gmra.mxu0 %v157
    %v246 = vpop.f32.mrf.mxu0
    %v247 = vadd.f32 %v182, %v246
    %v248 = vpop.f32.mrf.mxu0
    %v249 = vadd.f32 %v182, %v248
    %250 = vmatmul.bf16.gmra.mxu0 %v158
    %v251 = vpop.f32.mrf.mxu0
    %v252 = vadd.f32 %v182, %v251
    %v253 = vpop.f32.mrf.mxu0
    %v254 = vadd.f32 %v182, %v253
    %255 = vmatmul.bf16.gmra.mxu0 %v159
    %v256 = vpop.f32.mrf.mxu0
    %v257 = vadd.f32 %v182, %v256
    %v258 = vpop.f32.mrf.mxu0
    %v259 = vadd.f32 %v182, %v258
    %260 = vmatmul.bf16.gmra.mxu0 %v160
    %v261 = vpop.f32.mrf.mxu0
    %v262 = vadd.f32 %v182, %v261
    %v263 = vpop.f32.mrf.mxu0
    %v264 = vadd.f32 %v182, %v263
    %265 = vmatmul.bf16.gmra.mxu0 %v161
    %v266 = vpop.f32.mrf.mxu0
    %v267 = vadd.f32 %v182, %v266
    %v268 = vpop.f32.mrf.mxu0
    %v269 = vadd.f32 %v182, %v268
    %270 = vmatmul.bf16.gmra.mxu0 %v162
    %v271 = vpop.f32.mrf.mxu0
    %v272 = vadd.f32 %v182, %v271
    %v273 = vpop.f32.mrf.mxu0
    %v274 = vadd.f32 %v182, %v273
    %275 = vmatmul.bf16.gmra.mxu0 %v163
    %v276 = vpop.f32.mrf.mxu0
    %v277 = vadd.f32 %v182, %v276
    %v278 = vpop.f32.mrf.mxu0
    %v279 = vadd.f32 %v182, %v278
    %280 = vdwg.mxu0
    %v281 = vmax.f32 %v242, 0.0
    %v282 = vmax.f32 %v244, 0.0
    %v283 = vmax.f32 %v247, 0.0
    %v284 = vmax.f32 %v249, 0.0
    %v285 = vmax.f32 %v252, 0.0
    %v286 = vmax.f32 %v254, 0.0
    %v287 = vmax.f32 %v257, 0.0
    %v288 = vmax.f32 %v259, 0.0
    %v289 = vmax.f32 %v262, 0.0
    %v290 = vmax.f32 %v264, 0.0
    %v291 = vmax.f32 %v267, 0.0
    %v292 = vmax.f32 %v269, 0.0
    %v293 = vmax.f32 %v272, 0.0
    %v294 = vmax.f32 %v274, 0.0
    %v295 = vmax.f32 %v277, 0.0
    %v296 = vmax.f32 %v279, 0.0
    %v297 = vpack.c.bf16 %v282, %v281
    %v298 = vpack.c.bf16 %v284, %v283
    %v299 = vpack.c.bf16 %v286, %v285
    %v300 = vpack.c.bf16 %v288, %v287
    %v301 = vpack.c.bf16 %v290, %v289
    %v302 = vpack.c.bf16 %v292, %v291
    %v303 = vpack.c.bf16 %v294, %v293
    %v304 = vpack.c.bf16 %v296, %v295
    %s305 = scalar_lea.vmem %s3, 64
    %v306 = vld [vmem:[%s305] sm:$0xf]
    %v307 = vld [vmem:[%s305 + $0x4] sm:$0xf]
    %v308 = vld [vmem:[%s305 + $0x8] sm:$0xf]
    %v309 = vld [vmem:[%s305 + $0xc] sm:$0xf]
    %v310 = vld [vmem:[%s305 + $0x10] sm:$0xf]
    %v311 = vld [vmem:[%s305 + $0x14] sm:$0xf]
    %v312 = vld [vmem:[%s305 + $0x18] sm:$0xf]
    %v313 = vld [vmem:[%s305 + $0x1c] sm:$0xf]
    %v314 = vld [vmem:[%s305 + $0x20] sm:$0xf]
    %v315 = vld [vmem:[%s305 + $0x24] sm:$0xf]
    %v316 = vld [vmem:[%s305 + $0x28] sm:$0xf]
    %v317 = vld [vmem:[%s305 + $0x2c] sm:$0xf]
    %v318 = vld [vmem:[%s305 + $0x30] sm:$0xf]
    %v319 = vld [vmem:[%s305 + $0x34] sm:$0xf]
    %v320 = vld [vmem:[%s305 + $0x38] sm:$0xf]
    %v321 = vld [vmem:[%s305 + $0x3c] sm:$0xf]
    %s322 = scalar_lea.vmem %s4, 1
    %v323 = vld [vmem:[%s322] sm:$0x1]
    %v325 = vperm.slane %v323, 0
    %v343 = vunpack.c.l.b16 %v306
    %v344 = vunpack.c.l.b16 %v307
    %v345 = vunpack.c.l.b16 %v308
    %v346 = vunpack.c.l.b16 %v309
    %v347 = vunpack.c.l.b16 %v310
    %v348 = vunpack.c.l.b16 %v311
    %v349 = vunpack.c.l.b16 %v312
    %v350 = vunpack.c.l.b16 %v313
    %v351 = vunpack.c.l.b16 %v314
    %v352 = vunpack.c.l.b16 %v315
    %v353 = vunpack.c.l.b16 %v316
    %v354 = vunpack.c.l.b16 %v317
    %v355 = vunpack.c.l.b16 %v318
    %v356 = vunpack.c.l.b16 %v319
    %v357 = vunpack.c.l.b16 %v320
    %v358 = vunpack.c.l.b16 %v321
    %v359 = vpack.c.b16 %v344, %v343
    %v360 = vpack.c.b16 %v346, %v345
    %v361 = vpack.c.b16 %v348, %v347
    %v362 = vpack.c.b16 %v350, %v349
    %v363 = vpack.c.b16 %v352, %v351
    %v364 = vpack.c.b16 %v354, %v353
    %v365 = vpack.c.b16 %v356, %v355
    %v366 = vpack.c.b16 %v358, %v357
    %375 = vmatpush.bf16.msra.mxu0 %v366
    %376 = vmatpush.bf16.msra.mxu0 %v365
    %377 = vmatpush.bf16.msra.mxu0 %v364
    %378 = vmatpush.bf16.msra.mxu0 %v363
    %379 = vmatpush.bf16.msra.mxu0 %v362
    %380 = vmatpush.bf16.msra.mxu0 %v361
    %381 = vmatpush.bf16.msra.mxu0 %v360
    %382 = vmatpush.bf16.msra.mxu0 %v359
    %383 = vmatmul.bf16.gmra.mxu0 %v297
    %v384 = vpop.f32.mrf.mxu0
    %v385 = vadd.f32 %v325, %v384
    %v386 = vpop.f32.mrf.mxu0
    %v387 = vadd.f32 %v325, %v386
    %388 = vmatmul.bf16.gmra.mxu0 %v298
    %v389 = vpop.f32.mrf.mxu0
    %v390 = vadd.f32 %v325, %v389
    %v391 = vpop.f32.mrf.mxu0
    %v392 = vadd.f32 %v325, %v391
    %393 = vmatmul.bf16.gmra.mxu0 %v299
    %v394 = vpop.f32.mrf.mxu0
    %v395 = vadd.f32 %v325, %v394
    %v396 = vpop.f32.mrf.mxu0
    %v397 = vadd.f32 %v325, %v396
    %398 = vmatmul.bf16.gmra.mxu0 %v300
    %v399 = vpop.f32.mrf.mxu0
    %v400 = vadd.f32 %v325, %v399
    %v401 = vpop.f32.mrf.mxu0
    %v402 = vadd.f32 %v325, %v401
    %403 = vmatmul.bf16.gmra.mxu0 %v301
    %v404 = vpop.f32.mrf.mxu0
    %v405 = vadd.f32 %v325, %v404
    %v406 = vpop.f32.mrf.mxu0
    %v407 = vadd.f32 %v325, %v406
    %408 = vmatmul.bf16.gmra.mxu0 %v302
    %v409 = vpop.f32.mrf.mxu0
    %v410 = vadd.f32 %v325, %v409
    %v411 = vpop.f32.mrf.mxu0
    %v412 = vadd.f32 %v325, %v411
    %413 = vmatmul.bf16.gmra.mxu0 %v303
    %v414 = vpop.f32.mrf.mxu0
    %v415 = vadd.f32 %v325, %v414
    %v416 = vpop.f32.mrf.mxu0
    %v417 = vadd.f32 %v325, %v416
    %418 = vmatmul.bf16.gmra.mxu0 %v304
    %v419 = vpop.f32.mrf.mxu0
    %v420 = vadd.f32 %v325, %v419
    %v421 = vpop.f32.mrf.mxu0
    %v422 = vadd.f32 %v325, %v421
    %423 = vdwg.mxu0
    %v424 = vmax.f32 %v385, 0.0
    %v425 = vmax.f32 %v387, 0.0
    %v426 = vmax.f32 %v390, 0.0
    %v427 = vmax.f32 %v392, 0.0
    %v428 = vmax.f32 %v395, 0.0
    %v429 = vmax.f32 %v397, 0.0
    %v430 = vmax.f32 %v400, 0.0
    %v431 = vmax.f32 %v402, 0.0
    %v432 = vmax.f32 %v405, 0.0
    %v433 = vmax.f32 %v407, 0.0
    %v434 = vmax.f32 %v410, 0.0
    %v435 = vmax.f32 %v412, 0.0
    %v436 = vmax.f32 %v415, 0.0
    %v437 = vmax.f32 %v417, 0.0
    %v438 = vmax.f32 %v420, 0.0
    %v439 = vmax.f32 %v422, 0.0
    %v440 = vld [vmem:[%s5] sm:$0x1]
    %v441 = vpack.c.bf16 %v425, %v424
    %v442 = vpack.c.bf16 %v427, %v426
    %v443 = vpack.c.bf16 %v429, %v428
    %v444 = vpack.c.bf16 %v431, %v430
    %v445 = vpack.c.bf16 %v433, %v432
    %v446 = vpack.c.bf16 %v435, %v434
    %v447 = vpack.c.bf16 %v437, %v436
    %v448 = vpack.c.bf16 %v439, %v438
    %v449 = vld [vmem:[#allocation2] sm:$0x1]
    %451 = vset.pattern.permute.xlu0 0
    %452 = vperm.xlu0 %451, %v449
    %v453 = vpop.permute.xlu0 %452
    %v455 = vperm.slane %v453, 0
    %456 = vmatpush.bf16.xpose.msra.mxu0 %v448
    %457 = vmatpush.bf16.xpose.msra.mxu0 %v447
    %458 = vmatpush.bf16.xpose.msra.mxu0 %v446
    %459 = vmatpush.bf16.xpose.msra.mxu0 %v445
    %460 = vmatpush.bf16.xpose.msra.mxu0 %v444
    %461 = vmatpush.bf16.xpose.msra.mxu0 %v443
    %462 = vmatpush.bf16.xpose.msra.mxu0 %v442
    %463 = vmatpush.bf16.xpose.msra.mxu0 %v441
    %464 = vmatmul.bf16.gmra.mxu0 %v440
    %v465 = vpop.f32.mrf.mxu0
    %v466 = vadd.f32 %v455, %v465
    %v467 = vpop.f32.mrf.mxu0
    %468 = vdwg.mxu0
    %v469 = vmax.f32 %v466, 0.0
    %470 = vst [vmem:[#allocation3] sm:$0x1] %v469
    // Predicated region
    $region30: #{tpu_custom_call.1} parent=1 // pred_check
      _
    $region31: #{tpu_custom_call.1} parent=1 // pred_check_branch
      %472 = sbr.rel (0) target = $region33
    $region32: #{tpu_custom_call.1} parent=1 // pred_region
      %474 = vsyncadd [#allocation4], 0
      %s476 = sshll.u32 [#allocation3], 4
      %s477 = int_to_ptr.vmem [resolvable:$true] %s476
      %s478 = sshll.u32 %s7, 4
      %s479 = int_to_ptr.hbm [resolvable:$true] %s478
      %481 = dma.vmem_to_hbm [thread:$0]  %s477, 16, %s479, [#allocation4]
    $region33: #{tpu_custom_call.1} parent=1 // pred_fallthru
      _
    // Predicated region
    $region34: #{tpu_custom_call.1} parent=1 // pred_check
      _
    $region35: #{tpu_custom_call.1} parent=1 // pred_check_branch
      %483 = sbr.rel (0) target = $region37
    $region36: #{tpu_custom_call.1} parent=1 // pred_region
      %485 = dma.done [#allocation4], 16
    $region37: #{tpu_custom_call.1} parent=1 // pred_fallthru
      _
    %486 = vsyncpa [#allocation4], 1

</llo_original>
